<compile_context>
chip_gen: v7x
topology: tpu7x:2x2x1
jax: 0.10.0
libtpu: 0.0.40
codegen_flags: <defaults>
</compile_context>

<pallas_src>
import math

import jax
import jax.numpy as jnp
from jax.experimental import pallas as pl
from jax.experimental.pallas import tpu as pltpu

HIDDEN = 256
N_CHUNK = 128   # lane-aligned fc2 output-column chunk (fc3 fused per chunk)


def _round_up(n, m):
    return ((n + m - 1) // m) * m


def _pick_tile_b(B):
    """Batch tile: >=2 grid steps for B>8 (v7x megacore), <=128 rows for the
    common SAC batch (v5e MXU M pass), larger tiles for big batches."""
    if B <= 8:
        return B                                   # single full-dim block
    if B <= 256:
        return _round_up(pl.cdiv(B, 2), 8)          # ~2 blocks, <=128 rows
    if B <= 2048:
        return 256
    return 512


def _soft_q_kernel(x_ref, a_ref, w1x_ref, w1a_ref, b1_ref, w2_ref, b2_ref,
                   w3_ref, b3_ref, out_ref):
    """relu(x@W1x + a@W1a + b1) -> relu(.@W2 + b2) -> sum(. * w3) + b3."""
    wdt = w1x_ref.dtype                              # bf16 (default) or f32

    # fc1 -- the concat is folded into two matmuls; f32 accumulate, f32 bias
    # add + ReLU on the VPU (works on v5e which has no bf16 VALU).
    h1 = (jnp.dot(x_ref[...].astype(wdt), w1x_ref[...],
                  preferred_element_type=jnp.float32)
          + jnp.dot(a_ref[...].astype(wdt), w1a_ref[...],
                    preferred_element_type=jnp.float32)
          + b1_ref[...])
    # Single cast to the matmul dtype; only this copy lives across fc2.
    h1 = jnp.maximum(h1, 0.0).astype(wdt)

    # fc2 + fc3 fused, chunked over fc2's output columns so the full
    # (tile_b, 256) f32 h2 never exists.  The HIDDEN->1 head is a VPU
    # multiply + XLU cross-lane reduce per chunk (no degenerate N=1 matmul).
    q = jnp.zeros(out_ref.shape, jnp.float32)
    for c in range(HIDDEN // N_CHUNK):
        lo = c * N_CHUNK
        h2_c = (jnp.dot(h1, w2_ref[:, lo:lo + N_CHUNK],
                        preferred_element_type=jnp.float32)
                + b2_ref[:, lo:lo + N_CHUNK])
        h2_c = jnp.maximum(h2_c, 0.0)
        w3_c = w3_ref[:, lo:lo + N_CHUNK].astype(jnp.float32)
        q = q + jnp.sum(h2_c * w3_c, axis=-1, keepdims=True)

    out_ref[...] = (q + b3_ref[0]).astype(out_ref.dtype)


@jax.jit
def soft_q_forward(x, a, params):
    """Pallas-backed forward: x (B, OBS), a (B, ACT) -> q (B, 1) float32."""
    w1x, w1a, b1, w2, b2, w3, b3 = params
    B, obs_dim = x.shape
    act_dim = a.shape[1]

    tile_b = _pick_tile_b(B)
    grid = (pl.cdiv(B, tile_b),)                     # ragged last block OK

    resident = lambda shape: pl.BlockSpec(shape, lambda i: (0, 0))

    return pl.pallas_call(
        _soft_q_kernel,
        out_shape=jax.ShapeDtypeStruct((B, 1), jnp.float32),
        grid=grid,
        in_specs=[
            pl.BlockSpec((tile_b, obs_dim), lambda i: (i, 0)),   # x (streamed)
            pl.BlockSpec((tile_b, act_dim), lambda i: (i, 0)),   # a (streamed)
            resident((obs_dim, HIDDEN)),                         # W1x (pinned)
            resident((act_dim, HIDDEN)),                         # W1a (pinned)
            resident((1, HIDDEN)),                               # b1 (f32)
            resident((HIDDEN, HIDDEN)),                          # W2  (pinned)
            resident((1, HIDDEN)),                               # b2 (f32)
            resident((1, HIDDEN)),                               # w3 row
            pl.BlockSpec(memory_space=pltpu.MemorySpace.SMEM),   # b3 scalar
        ],
        out_specs=pl.BlockSpec((tile_b, 1), lambda i: (i, 0)),
        compiler_params=pltpu.CompilerParams(
            dimension_semantics=("parallel",)),
    )(x, a, w1x, w1a, b1, w2, b2, w3, b3)


def init_params(key, obs_dim, act_dim, param_dtype=jnp.bfloat16):
    """nn.Linear default init (U(-1/sqrt(fan_in), +1/sqrt(fan_in))).

    fc1's weight is split into W1x/W1a (the concat is folded into the kernel);
    weights are stored (in, out) = transpose of PyTorch's (out, in); fc3's
    weight is stored as a (1, HIDDEN) row.  Matmul weights default to bf16
    (MXU fast path); biases stay f32 and all accumulation is f32, so results
    differ from the f32 PyTorch module at the ~1e-2 level in the bf16 path."""
    d_in = obs_dim + act_dim
    keys = jax.random.split(key, 6)

    def uni(k, shape, fan_in):
        bound = 1.0 / math.sqrt(fan_in)
        return jax.random.uniform(k, shape, jnp.float32, -bound, bound)

    w1 = uni(keys[0], (d_in, HIDDEN), d_in)
    b1 = uni(keys[1], (1, HIDDEN), d_in)
    w2 = uni(keys[2], (HIDDEN, HIDDEN), HIDDEN)
    b2 = uni(keys[3], (1, HIDDEN), HIDDEN)
    w3 = uni(keys[4], (HIDDEN, 1), HIDDEN).reshape(1, HIDDEN)
    b3 = uni(keys[5], (1,), HIDDEN)

    cast = lambda w: w.astype(param_dtype)
    return (cast(w1[:obs_dim]), cast(w1[obs_dim:]), b1,
            cast(w2), b2, cast(w3), b3)


def reference_forward(x, a, params):
    """Pure-JAX reference (same math as the PyTorch module, f32 throughout)."""
    w1x, w1a, b1, w2, b2, w3, b3 = params
    f32 = lambda t: t.astype(jnp.float32)
    h1 = jax.nn.relu(x @ f32(w1x) + a @ f32(w1a) + b1)
    h2 = jax.nn.relu(h1 @ f32(w2) + b2)
    return h2 @ f32(w3).T + b3


def _check(q, q_ref, atol, rtol, tag):
    err = jnp.max(jnp.abs(q - q_ref))
    assert jnp.allclose(q, q_ref, atol=atol, rtol=rtol), (tag, float(err))


if __name__ == "__main__":
    key = jax.random.PRNGKey(0)
    k_params, k_x, k_a, k_x2, k_a2, k_x3, k_a3 = jax.random.split(key, 7)

    OBS_DIM, ACT_DIM = 8, 2

    # 1) Small-shape check (B=2) with f32 weights: exact-math path, tight-ish
    #    tolerance (MXU f32 pass strategy may differ from the XLA reference).
    params_f32 = init_params(k_params, OBS_DIM, ACT_DIM, param_dtype=jnp.float32)
    x = jax.random.normal(k_x, (2, OBS_DIM), jnp.float32)
    a = jax.random.uniform(k_a, (2, ACT_DIM), jnp.float32, -1.0, 1.0)
    q = jax.block_until_ready(soft_q_forward(x, a, params_f32))
    assert q.shape == (2, 1)
    _check(q, reference_forward(x, a, params_f32), 5e-3, 5e-3, "f32/B=2")

    # 2) Training-batch check (B=300, ragged tail block) with default bf16
    #    weights: exercises the multi-step grid, ragged writeback masking and
    #    the bf16 MXU path.
    params_bf16 = init_params(k_params, OBS_DIM, ACT_DIM)
    x2 = jax.random.normal(k_x2, (300, OBS_DIM), jnp.float32)
    a2 = jax.random.uniform(k_a2, (300, ACT_DIM), jnp.float32, -1.0, 1.0)
    q2 = jax.block_until_ready(soft_q_forward(x2, a2, params_bf16))
    assert q2.shape == (300, 1)
    _check(q2, reference_forward(x2, a2, params_bf16), 5e-2, 5e-2, "bf16/B=300")

    # 3) Mid-size batch (B=200): two-step grid from the split-in-two tile path
    #    (tile_b=104, ragged second block).
    x3 = jax.random.normal(k_x3, (200, OBS_DIM), jnp.float32)
    a3 = jax.random.uniform(k_a3, (200, ACT_DIM), jnp.float32, -1.0, 1.0)
    q3 = jax.block_until_ready(soft_q_forward(x3, a3, params_bf16))
    assert q3.shape == (200, 1)
    _check(q3, reference_forward(x3, a3, params_bf16), 5e-2, 5e-2, "bf16/B=200")

    print("KERNEL_OK")
</pallas_src>

<mosaic_0001>
module attributes {stable_mosaic.version = 11 : i64} {
  func.func @_soft_q_kernel(%arg0: i32, %arg1: memref<2x8xf32, #tpu.memory_space<vmem>>, %arg2: memref<2x2xf32, #tpu.memory_space<vmem>>, %arg3: memref<8x256xf32, #tpu.memory_space<vmem>>, %arg4: memref<2x256xf32, #tpu.memory_space<vmem>>, %arg5: memref<1x256xf32, #tpu.memory_space<vmem>>, %arg6: memref<256x256xf32, #tpu.memory_space<vmem>>, %arg7: memref<1x256xf32, #tpu.memory_space<vmem>>, %arg8: memref<1x256xf32, #tpu.memory_space<vmem>>, %arg9: memref<1xf32, #tpu.memory_space<smem>>, %arg10: memref<2x1xf32, #tpu.memory_space<vmem>>) attributes {dimension_semantics = [#tpu.dimension_semantics<parallel>], iteration_bounds = array<i64: 1>, scalar_prefetch = 0 : i64, scratch_operands = 0 : i64, tpu.core_type = #tpu.core_type<tc>, window_params = [{transform_indices = @transform_0, window_bounds = array<i64: 2, 8>}, {transform_indices = @transform_1, window_bounds = array<i64: 2, 2>}, {pipeline_mode = #tpu.pipeline_mode<synchronous>, transform_indices = @transform_2, window_bounds = array<i64: 8, 256>}, {pipeline_mode = #tpu.pipeline_mode<synchronous>, transform_indices = @transform_3, window_bounds = array<i64: 2, 256>}, {pipeline_mode = #tpu.pipeline_mode<synchronous>, transform_indices = @transform_4, window_bounds = array<i64: 1, 256>}, {pipeline_mode = #tpu.pipeline_mode<synchronous>, transform_indices = @transform_5, window_bounds = array<i64: 256, 256>}, {pipeline_mode = #tpu.pipeline_mode<synchronous>, transform_indices = @transform_6, window_bounds = array<i64: 1, 256>}, {pipeline_mode = #tpu.pipeline_mode<synchronous>, transform_indices = @transform_7, window_bounds = array<i64: 1, 256>}, {transform_indices = @transform_8, window_bounds = array<i64: 1>}, {transform_indices = @transform_9, window_bounds = array<i64: 2, 1>}]} {
    %c0 = arith.constant 0 : index
    %c0_0 = arith.constant 0 : index
    %0 = vector.load %arg1[%c0, %c0_0] : memref<2x8xf32, #tpu.memory_space<vmem>>, vector<2x8xf32>
    %c0_1 = arith.constant 0 : index
    %c0_2 = arith.constant 0 : index
    %1 = vector.load %arg3[%c0_1, %c0_2] : memref<8x256xf32, #tpu.memory_space<vmem>>, vector<8x256xf32>
    %cst = arith.constant dense<0.000000e+00> : vector<2x256xf32>
    %2 = tpu.matmul %0, %1, %cst {dimension_numbers = #tpu.dot_dimension_numbers<[1], [0], [0], [1], [0, 0, 1, 1], [], []>} : vector<2x8xf32>, vector<8x256xf32>, vector<2x256xf32> -> vector<2x256xf32>
    %c0_3 = arith.constant 0 : index
    %c0_4 = arith.constant 0 : index
    %3 = vector.load %arg2[%c0_3, %c0_4] : memref<2x2xf32, #tpu.memory_space<vmem>>, vector<2x2xf32>
    %c0_5 = arith.constant 0 : index
    %c0_6 = arith.constant 0 : index
    %4 = vector.load %arg4[%c0_5, %c0_6] : memref<2x256xf32, #tpu.memory_space<vmem>>, vector<2x256xf32>
    %cst_7 = arith.constant dense<0.000000e+00> : vector<2x256xf32>
    %5 = tpu.matmul %3, %4, %cst_7 {dimension_numbers = #tpu.dot_dimension_numbers<[1], [0], [0], [1], [0, 0, 1, 1], [], []>} : vector<2x2xf32>, vector<2x256xf32>, vector<2x256xf32> -> vector<2x256xf32>
    %6 = arith.addf %2, %5 : vector<2x256xf32>
    %c0_8 = arith.constant 0 : index
    %c0_9 = arith.constant 0 : index
    %7 = vector.load %arg5[%c0_8, %c0_9] : memref<1x256xf32, #tpu.memory_space<vmem>>, vector<1x256xf32>
    %8 = vector.broadcast %7 : vector<1x256xf32> to vector<2x256xf32>
    %9 = arith.addf %6, %8 : vector<2x256xf32>
    %cst_10 = arith.constant 0.000000e+00 : f32
    %10 = vector.broadcast %cst_10 : f32 to vector<2x256xf32>
    %11 = arith.maximumf %9, %10 : vector<2x256xf32>
    %cst_11 = arith.constant 0.000000e+00 : f32
    %12 = vector.broadcast %cst_11 : f32 to vector<2x1xf32>
    %c0_12 = arith.constant 0 : index
    %c0_13 = arith.constant 0 : index
    %13 = vector.load %arg6[%c0_12, %c0_13] : memref<256x256xf32, #tpu.memory_space<vmem>>, vector<256x128xf32>
    %cst_14 = arith.constant dense<0.000000e+00> : vector<2x128xf32>
    %14 = tpu.matmul %11, %13, %cst_14 {dimension_numbers = #tpu.dot_dimension_numbers<[1], [0], [0], [1], [0, 0, 1, 1], [], []>} : vector<2x256xf32>, vector<256x128xf32>, vector<2x128xf32> -> vector<2x128xf32>
    %c0_15 = arith.constant 0 : index
    %c0_16 = arith.constant 0 : index
    %15 = vector.load %arg7[%c0_15, %c0_16] : memref<1x256xf32, #tpu.memory_space<vmem>>, vector<1x128xf32>
    %16 = vector.broadcast %15 : vector<1x128xf32> to vector<2x128xf32>
    %17 = arith.addf %14, %16 : vector<2x128xf32>
    %cst_17 = arith.constant 0.000000e+00 : f32
    %18 = vector.broadcast %cst_17 : f32 to vector<2x128xf32>
    %19 = arith.maximumf %17, %18 : vector<2x128xf32>
    %c0_18 = arith.constant 0 : index
    %c0_19 = arith.constant 0 : index
    %20 = vector.load %arg8[%c0_18, %c0_19] : memref<1x256xf32, #tpu.memory_space<vmem>>, vector<1x128xf32>
    %21 = vector.broadcast %20 : vector<1x128xf32> to vector<2x128xf32>
    %22 = arith.mulf %19, %21 : vector<2x128xf32>
    %cst_20 = arith.constant dense<0.000000e+00> : vector<2xf32>
    %23 = vector.multi_reduction <add>, %22, %cst_20 [1] : vector<2x128xf32> to vector<2xf32>
    %24 = vector.shape_cast %23 : vector<2xf32> to vector<2x1xf32>
    %25 = arith.addf %12, %24 : vector<2x1xf32>
    %c0_21 = arith.constant 0 : index
    %c128 = arith.constant 128 : index
    %26 = vector.load %arg6[%c0_21, %c128] : memref<256x256xf32, #tpu.memory_space<vmem>>, vector<256x128xf32>
    %cst_22 = arith.constant dense<0.000000e+00> : vector<2x128xf32>
    %27 = tpu.matmul %11, %26, %cst_22 {dimension_numbers = #tpu.dot_dimension_numbers<[1], [0], [0], [1], [0, 0, 1, 1], [], []>} : vector<2x256xf32>, vector<256x128xf32>, vector<2x128xf32> -> vector<2x128xf32>
    %c0_23 = arith.constant 0 : index
    %c128_24 = arith.constant 128 : index
    %28 = vector.load %arg7[%c0_23, %c128_24] : memref<1x256xf32, #tpu.memory_space<vmem>>, vector<1x128xf32>
    %29 = vector.broadcast %28 : vector<1x128xf32> to vector<2x128xf32>
    %30 = arith.addf %27, %29 : vector<2x128xf32>
    %cst_25 = arith.constant 0.000000e+00 : f32
    %31 = vector.broadcast %cst_25 : f32 to vector<2x128xf32>
    %32 = arith.maximumf %30, %31 : vector<2x128xf32>
    %c0_26 = arith.constant 0 : index
    %c128_27 = arith.constant 128 : index
    %33 = vector.load %arg8[%c0_26, %c128_27] : memref<1x256xf32, #tpu.memory_space<vmem>>, vector<1x128xf32>
    %34 = vector.broadcast %33 : vector<1x128xf32> to vector<2x128xf32>
    %35 = arith.mulf %32, %34 : vector<2x128xf32>
    %cst_28 = arith.constant dense<0.000000e+00> : vector<2xf32>
    %36 = vector.multi_reduction <add>, %35, %cst_28 [1] : vector<2x128xf32> to vector<2xf32>
    %37 = vector.shape_cast %36 : vector<2xf32> to vector<2x1xf32>
    %38 = arith.addf %25, %37 : vector<2x1xf32>
    %c0_29 = arith.constant 0 : index
    %39 = memref.load %arg9[%c0_29] : memref<1xf32, #tpu.memory_space<smem>>
    %40 = vector.broadcast %39 : f32 to vector<2x1xf32>
    %41 = arith.addf %38, %40 : vector<2x1xf32>
    %c0_30 = arith.constant 0 : index
    %c0_31 = arith.constant 0 : index
    %42 = vector.load %arg10[%c0_30, %c0_31] : memref<2x1xf32, #tpu.memory_space<vmem>>, vector<2x1xf32>
    tpu.vector_store %arg10[%c0_30, %c0_31], %41 {strides = array<i32>} : memref<2x1xf32, #tpu.memory_space<vmem>>, vector<2x1xf32>,
    return
  }
  func.func @transform_0(%arg0: i32) -> (i32, i32) {
    %c0_i32 = arith.constant 0 : i32
    %c0_i32_0 = arith.constant 0 : i32
    return %arg0, %c0_i32 : i32, i32
  }
  func.func @transform_1(%arg0: i32) -> (i32, i32) {
    %c0_i32 = arith.constant 0 : i32
    %c0_i32_0 = arith.constant 0 : i32
    return %arg0, %c0_i32 : i32, i32
  }
  func.func @transform_2(%arg0: i32) -> (i32, i32) {
    %c0_i32 = arith.constant 0 : i32
    %c0_i32_0 = arith.constant 0 : i32
    %c0_i32_1 = arith.constant 0 : i32
    return %c0_i32, %c0_i32_0 : i32, i32
  }
  func.func @transform_3(%arg0: i32) -> (i32, i32) {
    %c0_i32 = arith.constant 0 : i32
    %c0_i32_0 = arith.constant 0 : i32
    %c0_i32_1 = arith.constant 0 : i32
    return %c0_i32, %c0_i32_0 : i32, i32
  }
  func.func @transform_4(%arg0: i32) -> (i32, i32) {
    %c0_i32 = arith.constant 0 : i32
    %c0_i32_0 = arith.constant 0 : i32
    %c0_i32_1 = arith.constant 0 : i32
    return %c0_i32, %c0_i32_0 : i32, i32
  }
  func.func @transform_5(%arg0: i32) -> (i32, i32) {
    %c0_i32 = arith.constant 0 : i32
    %c0_i32_0 = arith.constant 0 : i32
    %c0_i32_1 = arith.constant 0 : i32
    return %c0_i32, %c0_i32_0 : i32, i32
  }
  func.func @transform_6(%arg0: i32) -> (i32, i32) {
    %c0_i32 = arith.constant 0 : i32
    %c0_i32_0 = arith.constant 0 : i32
    %c0_i32_1 = arith.constant 0 : i32
    return %c0_i32, %c0_i32_0 : i32, i32
  }
  func.func @transform_7(%arg0: i32) -> (i32, i32) {
    %c0_i32 = arith.constant 0 : i32
    %c0_i32_0 = arith.constant 0 : i32
    %c0_i32_1 = arith.constant 0 : i32
    return %c0_i32, %c0_i32_0 : i32, i32
  }
  func.func @transform_8(%arg0: i32) -> i32 {
    %c0_i32 = arith.constant 0 : i32
    %c0_i32_0 = arith.constant 0 : i32
    return %c0_i32 : i32
  }
  func.func @transform_9(%arg0: i32) -> (i32, i32) {
    %c0_i32 = arith.constant 0 : i32
    %c0_i32_0 = arith.constant 0 : i32
    return %arg0, %c0_i32 : i32, i32
  }
}

</mosaic_0001>

<llo_original>
// kernel: soft_q_forward.1
$region0: #{soft_q_forward.1}
  #allocation0 [shape = 'u32[]', space=smem, size = 0x4, offset = 0x4, fixed_abs, tag = 'smem constant byte address 0x4 - core index']
  #allocation1 [shape = 'u32[144,128]{1,0:T(1,128)}', space=vmem, size = 0x12000, scoped, tag = 'internal scratch']
  #allocation2 [shape = 'f32[1]{0:T(128)S(6)}', space=smem, size = 0x200, scoped, tag = 'scoped memory for soft_q_forward.1']
  %s0 = inlined_call_operand.vmem [shape: f32[2,8], index: 0, kind: input, shape index: {}]
  %s1 = inlined_call_operand.hbm [shape: f32[2,2], index: 1, kind: input, shape index: {}]
  %s2 = inlined_call_operand.hbm [shape: f32[8,256], index: 2, kind: input, shape index: {}]
  %s3 = inlined_call_operand.vmem [shape: f32[2,256], index: 3, kind: input, shape index: {}]
  %s4 = inlined_call_operand.vmem [shape: f32[1,256], index: 4, kind: input, shape index: {}]
  %s5 = inlined_call_operand.hbm [shape: f32[256,256], index: 5, kind: input, shape index: {}]
  %s6 = inlined_call_operand.vmem [shape: f32[1,256], index: 6, kind: input, shape index: {}]
  %s7 = inlined_call_operand.vmem [shape: f32[1,256], index: 7, kind: input, shape index: {}]
  %s8 = inlined_call_operand.<no memory space> [shape: f32[1], index: 8, kind: input, shape index: {}]
  %s9 = inlined_call_operand.vmem [shape: f32[2,1], index: 9, kind: output, shape index: {}]
  %s10 = sld [smem:[#allocation0]]
  $region58: #{soft_q_forward.1} parent=0
    _
  %s12 = ssub.s32 1, %s10
  %s13 = scalar_select 0, %s12, %s10
  %14 = sst [smem:[#allocation2]] %s8
  $region1: #{soft_q_forward.1} parent=0
    #allocation3 [shape = 'u8[1024]{0}', space=vmem, size = 0x400, scoped, tag = 'input window, operand 1, single buffered']
    #allocation4 [shape = 's32[1]{0}', space=sflag, size = 0x4, scoped, tag = 'scoped memory for soft_q_forward.1']
    #allocation5 [shape = 'u8[8192]{0}', space=vmem, size = 0x2000, scoped, tag = 'input window, operand 2, single buffered']
    #allocation6 [shape = 's32[1]{0}', space=sflag, size = 0x4, scoped, tag = 'scoped memory for soft_q_forward.1']
    #allocation7 [shape = 'u8[262144]{0}', space=vmem, size = 0x40000, scoped, tag = 'input window, operand 5, single buffered']
    %15 = vsyncpa [#allocation4], 0
    %16 = vsyncpa [#allocation6], 0
    // Predicated region
    $region2: #{soft_q_forward.1} parent=1 // pred_check
      _
    $region3: #{soft_q_forward.1} parent=1 // pred_check_branch
      %18 = sbr.rel (0) target = $region5
    $region4: #{soft_q_forward.1} parent=1 // pred_region
      _
    $region5: #{soft_q_forward.1} parent=1 // pred_fallthru
      _
    // Predicated region
    $region6: #{soft_q_forward.1} parent=1 // pred_check
      _
    $region7: #{soft_q_forward.1} parent=1 // pred_check_branch
      %20 = sbr.rel (0) target = $region9
    $region8: #{soft_q_forward.1} parent=1 // pred_region
      %s22 = ssub.s32 32, 32
      %23 = vsyncadd [#allocation4], %s22
      %s25 = sshll.u32 [#allocation3], 4
      %s26 = int_to_ptr.vmem [resolvable:$true] %s25
      %28 = dma.hbm_to_vmem [thread:$0]  %s1, 32, %s26, [#allocation4]
    $region9: #{soft_q_forward.1} parent=1 // pred_fallthru
      _
    // Predicated region
    $region10: #{soft_q_forward.1} parent=1 // pred_check
      _
    $region11: #{soft_q_forward.1} parent=1 // pred_check_branch
      %30 = sbr.rel (0) target = $region13
    $region12: #{soft_q_forward.1} parent=1 // pred_region
      %s32 = ssub.s32 256, 256
      %33 = vsyncadd [#allocation6], %s32
      %s35 = sshll.u32 [#allocation5], 4
      %s36 = int_to_ptr.vmem [resolvable:$true] %s35
      %38 = dma.hbm_to_vmem [thread:$0]  %s2, 256, %s36, [#allocation6]
    $region13: #{soft_q_forward.1} parent=1 // pred_fallthru
      _
    // Predicated region
    $region14: #{soft_q_forward.1} parent=1 // pred_check
      _
    $region15: #{soft_q_forward.1} parent=1 // pred_check_branch
      %40 = sbr.rel (0) target = $region17
    $region16: #{soft_q_forward.1} parent=1 // pred_region
      _
    $region17: #{soft_q_forward.1} parent=1 // pred_fallthru
      _
    // Predicated region
    $region18: #{soft_q_forward.1} parent=1 // pred_check
      _
    $region19: #{soft_q_forward.1} parent=1 // pred_check_branch
      %42 = sbr.rel (0) target = $region21
    $region20: #{soft_q_forward.1} parent=1 // pred_region
      _
    $region21: #{soft_q_forward.1} parent=1 // pred_fallthru
      _
    // Predicated region
    $region22: #{soft_q_forward.1} parent=1 // pred_check
      _
    $region23: #{soft_q_forward.1} parent=1 // pred_check_branch
      %44 = sbr.rel (0) target = $region25
    $region24: #{soft_q_forward.1} parent=1 // pred_region
      %s46 = ssub.s32 8192, 8192
      %47 = vsyncadd [#allocation6], %s46
      %s48 = sshll.u32 [#allocation7], 4
      %s49 = int_to_ptr.vmem [resolvable:$true] %s48
      %54 = dma.hbm_to_vmem [thread:$0]  %s5, 8192, %s49, [#allocation6], 256, 256, 16
    $region25: #{soft_q_forward.1} parent=1 // pred_fallthru
      _
    // Predicated region
    $region26: #{soft_q_forward.1} parent=1 // pred_check
      _
    $region27: #{soft_q_forward.1} parent=1 // pred_check_branch
      %56 = sbr.rel (0) target = $region29
    $region28: #{soft_q_forward.1} parent=1 // pred_region
      _
    $region29: #{soft_q_forward.1} parent=1 // pred_fallthru
      _
    // Predicated region
    $region30: #{soft_q_forward.1} parent=1 // pred_check
      _
    $region31: #{soft_q_forward.1} parent=1 // pred_check_branch
      %58 = sbr.rel (0) target = $region33
    $region32: #{soft_q_forward.1} parent=1 // pred_region
      _
    $region33: #{soft_q_forward.1} parent=1 // pred_fallthru
      _
    // Predicated region
    $region34: #{soft_q_forward.1} parent=1 // pred_check
      _
    $region35: #{soft_q_forward.1} parent=1 // pred_check_branch
      %60 = sbr.rel (0) target = $region37
    $region36: #{soft_q_forward.1} parent=1 // pred_region
      _
    $region37: #{soft_q_forward.1} parent=1 // pred_fallthru
      _
    // Predicated region
    $region38: #{soft_q_forward.1} parent=1 // pred_check
      _
    $region39: #{soft_q_forward.1} parent=1 // pred_check_branch
      %62 = sbr.rel (0) target = $region41
    $region40: #{soft_q_forward.1} parent=1 // pred_region
      %63 = dma.done [#allocation4], 32
    $region41: #{soft_q_forward.1} parent=1 // pred_fallthru
      _
    // Predicated region
    $region42: #{soft_q_forward.1} parent=1 // pred_check
      _
    $region43: #{soft_q_forward.1} parent=1 // pred_check_branch
      %65 = sbr.rel (0) target = $region45
    $region44: #{soft_q_forward.1} parent=1 // pred_region
      %66 = dma.done [#allocation6], 256
    $region45: #{soft_q_forward.1} parent=1 // pred_fallthru
      _
    // Predicated region
    $region46: #{soft_q_forward.1} parent=1 // pred_check
      _
    $region47: #{soft_q_forward.1} parent=1 // pred_check_branch
      %68 = sbr.rel (0) target = $region49
    $region48: #{soft_q_forward.1} parent=1 // pred_region
      %69 = dma.done [#allocation6], 8192
    $region49: #{soft_q_forward.1} parent=1 // pred_fallthru
      _
    %v70 = vld [vmem:[%s0] sm:$0x3]
    %v71 = vld [vmem:[#allocation5] sm:$0xff]
    %v72 = vld [vmem:[#allocation5 + $0x8] sm:$0xff]
    %v73 = vld [vmem:[#allocation3] sm:$0x3]
    %v74 = vld [vmem:[%s3] sm:$0xf]
    %v77 = vunpack.c.l.s4 1983009808
    %v78 = vunpack.c.0.s8 %v77
    %v79 = vlaneseq
    %v80 = vshrl.u32 %v79, 7
    %v81 = vsub.s32 %v78, %v80
    %v82 = vrot.slane %v74, %v81
    %v83 = vcombine.high %v82, %v82
    %vm84 = vcmask 15360
    %v86 = vsel %vm84, %v73, 0
    %vm88 = vcmask 1041408
    %v89 = vsel %vm88, %v82, 0
    %v91 = vsel %vm88, %v83, 0
    %93 = vmatprep.subr.mxu0 %v91
    %94 = vmatpush1.msra.mxu0 %v89
    %95 = vmatprep.subr.mxu0 0.0
    %96 = vmatpush1.msra.mxu0 0.0
    %97 = vmatprep.subr.mxu0 0.0
    %98 = vmatpush1.msra.mxu0 0.0
    %99 = vmatprep.subr.mxu0 0.0
    %100 = vmatpush1.msra.mxu0 0.0
    %101 = vmatprep.subr.mxu0 0.0
    %102 = vmatpush1.msra.mxu0 0.0
    %103 = vmatprep.subr.mxu0 0.0
    %104 = vmatpush1.msra.mxu0 0.0
    %105 = vmatprep.subr.mxu0 0.0
    %106 = vmatpush1.msra.mxu0 0.0
    %107 = vmatprep.subr.mxu0 0.0
    %108 = vmatpush1.msra.mxu0 0.0
    %109 = vmatprep.subr.mxu0 0.0
    %110 = vmatpush1.msra.mxu0 0.0
    %111 = vmatprep.subr.mxu0 0.0
    %112 = vmatpush1.msra.mxu0 0.0
    %113 = vmatprep.subr.mxu0 0.0
    %114 = vmatpush1.msra.mxu0 0.0
    %115 = vmatprep.subr.mxu0 0.0
    %116 = vmatpush1.msra.mxu0 0.0
    %117 = vmatprep.subr.mxu0 0.0
    %118 = vmatpush1.msra.mxu0 0.0
    %119 = vmatprep.subr.mxu0 0.0
    %120 = vmatpush1.msra.mxu0 0.0
    %121 = vmatprep.subr.mxu0 0.0
    %122 = vmatpush1.msra.mxu0 0.0
    %123 = vmatprep.subr.mxu0 0.0
    %124 = vmatpush1.msra.mxu0 0.0
    %125 = vmatprep.subr.mxu0 0.0
    %126 = vmatpush1.msra.mxu0 0.0
    %127 = vmatprep.subr.mxu0 0.0
    %128 = vmatpush1.msra.mxu0 0.0
    %129 = vmatprep.subr.mxu0 0.0
    %130 = vmatpush1.msra.mxu0 0.0
    %131 = vmatprep.subr.mxu0 0.0
    %132 = vmatpush1.msra.mxu0 0.0
    %133 = vmatprep.subr.mxu0 0.0
    %134 = vmatpush1.msra.mxu0 0.0
    %135 = vmatprep.subr.mxu0 0.0
    %136 = vmatpush1.msra.mxu0 0.0
    %137 = vmatprep.subr.mxu0 0.0
    %138 = vmatpush1.msra.mxu0 0.0
    %139 = vmatprep.subr.mxu0 0.0
    %140 = vmatpush1.msra.mxu0 0.0
    %141 = vmatprep.subr.mxu0 0.0
    %142 = vmatpush1.msra.mxu0 0.0
    %143 = vmatprep.subr.mxu0 0.0
    %144 = vmatpush1.msra.mxu0 0.0
    %145 = vmatprep.subr.mxu0 0.0
    %146 = vmatpush1.msra.mxu0 0.0
    %147 = vmatprep.subr.mxu0 0.0
    %148 = vmatpush1.msra.mxu0 0.0
    %149 = vmatprep.subr.mxu0 0.0
    %150 = vmatpush1.msra.mxu0 0.0
    %151 = vmatprep.subr.mxu0 0.0
    %152 = vmatpush1.msra.mxu0 0.0
    %153 = vmatprep.subr.mxu0 0.0
    %154 = vmatpush1.msra.mxu0 0.0
    %155 = vmatprep.subr.mxu0 0.0
    %156 = vmatpush1.msra.mxu0 0.0
    %157 = vmatprep.mubr.f32.mxu0 0.0
    %158 = vmatmul.mubr.f32.gmra.mrb[0].mxu0 %v86
    %v159 = vpop.f32.mrb[0].mxu0
    %v160 = vadd.f32 0.0, %v159
    %v161 = vpop.f32.mrb[0].mxu0
    %v162 = vadd.f32 0.0, %v161
    %163 = vdwg.mxu0
    %vm164 = vcmask 64512
    %v166 = vsel %vm164, %v70, 0
    %168 = vmatprep.subr.mxu0 %v72
    %169 = vmatpush1.msra.mxu0 %v71
    %170 = vmatprep.subr.mxu0 0.0
    %171 = vmatpush1.msra.mxu0 0.0
    %172 = vmatprep.subr.mxu0 0.0
    %173 = vmatpush1.msra.mxu0 0.0
    %174 = vmatprep.subr.mxu0 0.0
    %175 = vmatpush1.msra.mxu0 0.0
    %176 = vmatprep.subr.mxu0 0.0
    %177 = vmatpush1.msra.mxu0 0.0
    %178 = vmatprep.subr.mxu0 0.0
    %179 = vmatpush1.msra.mxu0 0.0
    %180 = vmatprep.subr.mxu0 0.0
    %181 = vmatpush1.msra.mxu0 0.0
    %182 = vmatprep.subr.mxu0 0.0
    %183 = vmatpush1.msra.mxu0 0.0
    %184 = vmatprep.subr.mxu0 0.0
    %185 = vmatpush1.msra.mxu0 0.0
    %186 = vmatprep.subr.mxu0 0.0
    %187 = vmatpush1.msra.mxu0 0.0
    %188 = vmatprep.subr.mxu0 0.0
    %189 = vmatpush1.msra.mxu0 0.0
    %190 = vmatprep.subr.mxu0 0.0
    %191 = vmatpush1.msra.mxu0 0.0
    %192 = vmatprep.subr.mxu0 0.0
    %193 = vmatpush1.msra.mxu0 0.0
    %194 = vmatprep.subr.mxu0 0.0
    %195 = vmatpush1.msra.mxu0 0.0
    %196 = vmatprep.subr.mxu0 0.0
    %197 = vmatpush1.msra.mxu0 0.0
    %198 = vmatprep.subr.mxu0 0.0
    %199 = vmatpush1.msra.mxu0 0.0
    %200 = vmatprep.subr.mxu0 0.0
    %201 = vmatpush1.msra.mxu0 0.0
    %202 = vmatprep.subr.mxu0 0.0
    %203 = vmatpush1.msra.mxu0 0.0
    %204 = vmatprep.subr.mxu0 0.0
    %205 = vmatpush1.msra.mxu0 0.0
    %206 = vmatprep.subr.mxu0 0.0
    %207 = vmatpush1.msra.mxu0 0.0
    %208 = vmatprep.subr.mxu0 0.0
    %209 = vmatpush1.msra.mxu0 0.0
    %210 = vmatprep.subr.mxu0 0.0
    %211 = vmatpush1.msra.mxu0 0.0
    %212 = vmatprep.subr.mxu0 0.0
    %213 = vmatpush1.msra.mxu0 0.0
    %214 = vmatprep.subr.mxu0 0.0
    %215 = vmatpush1.msra.mxu0 0.0
    %216 = vmatprep.subr.mxu0 0.0
    %217 = vmatpush1.msra.mxu0 0.0
    %218 = vmatprep.subr.mxu0 0.0
    %219 = vmatpush1.msra.mxu0 0.0
    %220 = vmatprep.subr.mxu0 0.0
    %221 = vmatpush1.msra.mxu0 0.0
    %222 = vmatprep.subr.mxu0 0.0
    %223 = vmatpush1.msra.mxu0 0.0
    %224 = vmatprep.subr.mxu0 0.0
    %225 = vmatpush1.msra.mxu0 0.0
    %226 = vmatprep.subr.mxu0 0.0
    %227 = vmatpush1.msra.mxu0 0.0
    %228 = vmatprep.subr.mxu0 0.0
    %229 = vmatpush1.msra.mxu0 0.0
    %230 = vmatprep.subr.mxu0 0.0
    %231 = vmatpush1.msra.mxu0 0.0
    %232 = vmatprep.mubr.f32.mxu0 0.0
    %233 = vmatmul.mubr.f32.gmra.mrb[0].mxu0 %v166
    %v234 = vpop.f32.mrb[0].mxu0
    %v235 = vadd.f32 %v160, %v234
    %v236 = vpop.f32.mrb[0].mxu0
    %v237 = vadd.f32 %v162, %v236
    %238 = vdwg.mxu0
    %v239 = vld [vmem:[%s4] sm:$0x3]
    %v241 = vlaneseq
    %v242 = vshrl.u32 %v241, 7
    %v243 = vsub.s32 0, %v242
    %v244 = vrot.slane %v239, %v243
    %v245 = vlaneseq
    %v246 = vshrl.u32 %v245, 7
    %v247 = vsub.s32 1, %v246
    %v248 = vrot.slane %v239, %v247
    %v251 = vadd.f32 %v235, %v244
    %v252 = vadd.f32 %v237, %v248
    %v253 = vmax.f32 %v251, 0.0
    %v254 = vmax.f32 %v252, 0.0
    %v255 = vld [vmem:[#allocation7] sm:$0xff]
    %v256 = vld [vmem:[#allocation7 + $0x10] sm:$0xff]
    %v257 = vld [vmem:[#allocation7 + $0x20] sm:$0xff]
    %v258 = vld [vmem:[#allocation7 + $0x30] sm:$0xff]
    %v259 = vld [vmem:[#allocation7 + $0x40] sm:$0xff]
    %v260 = vld [vmem:[#allocation7 + $0x50] sm:$0xff]
    %v261 = vld [vmem:[#allocation7 + $0x60] sm:$0xff]
    %v262 = vld [vmem:[#allocation7 + $0x70] sm:$0xff]
    %v263 = vld [vmem:[#allocation7 + $0x80] sm:$0xff]
    %v264 = vld [vmem:[#allocation7 + $0x90] sm:$0xff]
    %v265 = vld [vmem:[#allocation7 + $0xa0] sm:$0xff]
    %v266 = vld [vmem:[#allocation7 + $0xb0] sm:$0xff]
    %v267 = vld [vmem:[#allocation7 + $0xc0] sm:$0xff]
    %v268 = vld [vmem:[#allocation7 + $0xd0] sm:$0xff]
    %v269 = vld [vmem:[#allocation7 + $0xe0] sm:$0xff]
    %v270 = vld [vmem:[#allocation7 + $0xf0] sm:$0xff]
    %v271 = vld [vmem:[#allocation7 + $0x100] sm:$0xff]
    %v272 = vld [vmem:[#allocation7 + $0x110] sm:$0xff]
    %v273 = vld [vmem:[#allocation7 + $0x120] sm:$0xff]
    %v274 = vld [vmem:[#allocation7 + $0x130] sm:$0xff]
    %v275 = vld [vmem:[#allocation7 + $0x140] sm:$0xff]
    %v276 = vld [vmem:[#allocation7 + $0x150] sm:$0xff]
    %v277 = vld [vmem:[#allocation7 + $0x160] sm:$0xff]
    %v278 = vld [vmem:[#allocation7 + $0x170] sm:$0xff]
    %v279 = vld [vmem:[#allocation7 + $0x180] sm:$0xff]
    %v280 = vld [vmem:[#allocation7 + $0x190] sm:$0xff]
    %v281 = vld [vmem:[#allocation7 + $0x1a0] sm:$0xff]
    %v282 = vld [vmem:[#allocation7 + $0x1b0] sm:$0xff]
    %v283 = vld [vmem:[#allocation7 + $0x1c0] sm:$0xff]
    %v284 = vld [vmem:[#allocation7 + $0x1d0] sm:$0xff]
    %v285 = vld [vmem:[#allocation7 + $0x1e0] sm:$0xff]
    %v286 = vld [vmem:[#allocation7 + $0x1f0] sm:$0xff]
    %v287 = vld [vmem:[%s6] sm:$0x1]
    %v289 = vlaneseq
    %v290 = vshrl.u32 %v289, 7
    %v291 = vsub.s32 0, %v290
    %v292 = vrot.slane %v287, %v291
    %294 = vmatprep.subr.mxu0 0.0
    %295 = vmatpush1.msra.mxu0 %v255
    %296 = vmatprep.subr.mxu0 0.0
    %297 = vmatpush1.msra.mxu0 %v256
    %298 = vmatprep.subr.mxu0 0.0
    %299 = vmatpush1.msra.mxu0 %v257
    %300 = vmatprep.subr.mxu0 0.0
    %301 = vmatpush1.msra.mxu0 %v258
    %302 = vmatprep.subr.mxu0 0.0
    %303 = vmatpush1.msra.mxu0 %v259
    %304 = vmatprep.subr.mxu0 0.0
    %305 = vmatpush1.msra.mxu0 %v260
    %306 = vmatprep.subr.mxu0 0.0
    %307 = vmatpush1.msra.mxu0 %v261
    %308 = vmatprep.subr.mxu0 0.0
    %309 = vmatpush1.msra.mxu0 %v262
    %310 = vmatprep.subr.mxu0 0.0
    %311 = vmatpush1.msra.mxu0 %v263
    %312 = vmatprep.subr.mxu0 0.0
    %313 = vmatpush1.msra.mxu0 %v264
    %314 = vmatprep.subr.mxu0 0.0
    %315 = vmatpush1.msra.mxu0 %v265
    %316 = vmatprep.subr.mxu0 0.0
    %317 = vmatpush1.msra.mxu0 %v266
    %318 = vmatprep.subr.mxu0 0.0
    %319 = vmatpush1.msra.mxu0 %v267
    %320 = vmatprep.subr.mxu0 0.0
    %321 = vmatpush1.msra.mxu0 %v268
    %322 = vmatprep.subr.mxu0 0.0
    %323 = vmatpush1.msra.mxu0 %v269
    %324 = vmatprep.subr.mxu0 0.0
    %325 = vmatpush1.msra.mxu0 %v270
    %326 = vmatprep.subr.mxu0 0.0
    %327 = vmatpush1.msra.mxu0 %v271
    %328 = vmatprep.subr.mxu0 0.0
    %329 = vmatpush1.msra.mxu0 %v272
    %330 = vmatprep.subr.mxu0 0.0
    %331 = vmatpush1.msra.mxu0 %v273
    %332 = vmatprep.subr.mxu0 0.0
    %333 = vmatpush1.msra.mxu0 %v274
    %334 = vmatprep.subr.mxu0 0.0
    %335 = vmatpush1.msra.mxu0 %v275
    %336 = vmatprep.subr.mxu0 0.0
    %337 = vmatpush1.msra.mxu0 %v276
    %338 = vmatprep.subr.mxu0 0.0
    %339 = vmatpush1.msra.mxu0 %v277
    %340 = vmatprep.subr.mxu0 0.0
    %341 = vmatpush1.msra.mxu0 %v278
    %342 = vmatprep.subr.mxu0 0.0
    %343 = vmatpush1.msra.mxu0 %v279
    %344 = vmatprep.subr.mxu0 0.0
    %345 = vmatpush1.msra.mxu0 %v280
    %346 = vmatprep.subr.mxu0 0.0
    %347 = vmatpush1.msra.mxu0 %v281
    %348 = vmatprep.subr.mxu0 0.0
    %349 = vmatpush1.msra.mxu0 %v282
    %350 = vmatprep.subr.mxu0 0.0
    %351 = vmatpush1.msra.mxu0 %v283
    %352 = vmatprep.subr.mxu0 0.0
    %353 = vmatpush1.msra.mxu0 %v284
    %354 = vmatprep.subr.mxu0 0.0
    %355 = vmatpush1.msra.mxu0 %v285
    %356 = vmatprep.subr.mxu0 0.0
    %357 = vmatpush1.msra.mxu0 %v286
    %358 = vmatprep.mubr.f32.mxu0 %v254
    %359 = vmatmul.mubr.f32.gmra.mrb[0].mxu0 %v253
    %v360 = vpop.f32.mrb[0].mxu0
    %v361 = vadd.f32 %v292, %v360
    %v362 = vpop.f32.mrb[0].mxu0
    %363 = vdwg.mxu0
    %v364 = vmax.f32 %v361, 0.0
    %v365 = vld [vmem:[%s7] sm:$0x1]
    %v367 = vlaneseq
    %v368 = vshrl.u32 %v367, 7
    %v369 = vsub.s32 0, %v368
    %v370 = vrot.slane %v365, %v369
    %v372 = vmul.f32 %v364, %v370
    %v373 = vsel %vm88, %v372, 0.0
    %374 = vadd.xlane.f32.xlu0 %v373
    %v375 = vpop.xlane.xlu0 %374
    %v376 = vadd.f32 %v375, 0.0
    %v377 = vld [vmem:[#allocation7 + $0x8] sm:$0xff]
    %v378 = vld [vmem:[#allocation7 + $0x18] sm:$0xff]
    %v379 = vld [vmem:[#allocation7 + $0x28] sm:$0xff]
    %v380 = vld [vmem:[#allocation7 + $0x38] sm:$0xff]
    %v381 = vld [vmem:[#allocation7 + $0x48] sm:$0xff]
    %v382 = vld [vmem:[#allocation7 + $0x58] sm:$0xff]
    %v383 = vld [vmem:[#allocation7 + $0x68] sm:$0xff]
    %v384 = vld [vmem:[#allocation7 + $0x78] sm:$0xff]
    %v385 = vld [vmem:[#allocation7 + $0x88] sm:$0xff]
    %v386 = vld [vmem:[#allocation7 + $0x98] sm:$0xff]
    %v387 = vld [vmem:[#allocation7 + $0xa8] sm:$0xff]
    %v388 = vld [vmem:[#allocation7 + $0xb8] sm:$0xff]
    %v389 = vld [vmem:[#allocation7 + $0xc8] sm:$0xff]
    %v390 = vld [vmem:[#allocation7 + $0xd8] sm:$0xff]
    %v391 = vld [vmem:[#allocation7 + $0xe8] sm:$0xff]
    %v392 = vld [vmem:[#allocation7 + $0xf8] sm:$0xff]
    %v393 = vld [vmem:[#allocation7 + $0x108] sm:$0xff]
    %v394 = vld [vmem:[#allocation7 + $0x118] sm:$0xff]
    %v395 = vld [vmem:[#allocation7 + $0x128] sm:$0xff]
    %v396 = vld [vmem:[#allocation7 + $0x138] sm:$0xff]
    %v397 = vld [vmem:[#allocation7 + $0x148] sm:$0xff]
    %v398 = vld [vmem:[#allocation7 + $0x158] sm:$0xff]
    %v399 = vld [vmem:[#allocation7 + $0x168] sm:$0xff]
    %v400 = vld [vmem:[#allocation7 + $0x178] sm:$0xff]
    %v401 = vld [vmem:[#allocation7 + $0x188] sm:$0xff]
    %v402 = vld [vmem:[#allocation7 + $0x198] sm:$0xff]
    %v403 = vld [vmem:[#allocation7 + $0x1a8] sm:$0xff]
    %v404 = vld [vmem:[#allocation7 + $0x1b8] sm:$0xff]
    %v405 = vld [vmem:[#allocation7 + $0x1c8] sm:$0xff]
    %v406 = vld [vmem:[#allocation7 + $0x1d8] sm:$0xff]
    %v407 = vld [vmem:[#allocation7 + $0x1e8] sm:$0xff]
    %v408 = vld [vmem:[#allocation7 + $0x1f8] sm:$0xff]
    %v409 = vld [vmem:[%s6 + $0x1] sm:$0x1]
    %v411 = vlaneseq
    %v412 = vshrl.u32 %v411, 7
    %v413 = vsub.s32 0, %v412
    %v414 = vrot.slane %v409, %v413
    %416 = vmatprep.subr.mxu0 0.0
    %417 = vmatpush1.msra.mxu0 %v377
    %418 = vmatprep.subr.mxu0 0.0
    %419 = vmatpush1.msra.mxu0 %v378
    %420 = vmatprep.subr.mxu0 0.0
    %421 = vmatpush1.msra.mxu0 %v379
    %422 = vmatprep.subr.mxu0 0.0
    %423 = vmatpush1.msra.mxu0 %v380
    %424 = vmatprep.subr.mxu0 0.0
    %425 = vmatpush1.msra.mxu0 %v381
    %426 = vmatprep.subr.mxu0 0.0
    %427 = vmatpush1.msra.mxu0 %v382
    %428 = vmatprep.subr.mxu0 0.0
    %429 = vmatpush1.msra.mxu0 %v383
    %430 = vmatprep.subr.mxu0 0.0
    %431 = vmatpush1.msra.mxu0 %v384
    %432 = vmatprep.subr.mxu0 0.0
    %433 = vmatpush1.msra.mxu0 %v385
    %434 = vmatprep.subr.mxu0 0.0
    %435 = vmatpush1.msra.mxu0 %v386
    %436 = vmatprep.subr.mxu0 0.0
    %437 = vmatpush1.msra.mxu0 %v387
    %438 = vmatprep.subr.mxu0 0.0
    %439 = vmatpush1.msra.mxu0 %v388
    %440 = vmatprep.subr.mxu0 0.0
    %441 = vmatpush1.msra.mxu0 %v389
    %442 = vmatprep.subr.mxu0 0.0
    %443 = vmatpush1.msra.mxu0 %v390
    %444 = vmatprep.subr.mxu0 0.0
    %445 = vmatpush1.msra.mxu0 %v391
    %446 = vmatprep.subr.mxu0 0.0
    %447 = vmatpush1.msra.mxu0 %v392
    %448 = vmatprep.subr.mxu0 0.0
    %449 = vmatpush1.msra.mxu0 %v393
    %450 = vmatprep.subr.mxu0 0.0
    %451 = vmatpush1.msra.mxu0 %v394
    %452 = vmatprep.subr.mxu0 0.0
    %453 = vmatpush1.msra.mxu0 %v395
    %454 = vmatprep.subr.mxu0 0.0
    %455 = vmatpush1.msra.mxu0 %v396
    %456 = vmatprep.subr.mxu0 0.0
    %457 = vmatpush1.msra.mxu0 %v397
    %458 = vmatprep.subr.mxu0 0.0
    %459 = vmatpush1.msra.mxu0 %v398
    %460 = vmatprep.subr.mxu0 0.0
    %461 = vmatpush1.msra.mxu0 %v399
    %462 = vmatprep.subr.mxu0 0.0
    %463 = vmatpush1.msra.mxu0 %v400
    %464 = vmatprep.subr.mxu0 0.0
    %465 = vmatpush1.msra.mxu0 %v401
    %466 = vmatprep.subr.mxu0 0.0
    %467 = vmatpush1.msra.mxu0 %v402
    %468 = vmatprep.subr.mxu0 0.0
    %469 = vmatpush1.msra.mxu0 %v403
    %470 = vmatprep.subr.mxu0 0.0
    %471 = vmatpush1.msra.mxu0 %v404
    %472 = vmatprep.subr.mxu0 0.0
    %473 = vmatpush1.msra.mxu0 %v405
    %474 = vmatprep.subr.mxu0 0.0
    %475 = vmatpush1.msra.mxu0 %v406
    %476 = vmatprep.subr.mxu0 0.0
    %477 = vmatpush1.msra.mxu0 %v407
    %478 = vmatprep.subr.mxu0 0.0
    %479 = vmatpush1.msra.mxu0 %v408
    %480 = vmatprep.mubr.f32.mxu0 %v254
    %481 = vmatmul.mubr.f32.gmra.mrb[0].mxu0 %v253
    %v482 = vpop.f32.mrb[0].mxu0
    %v483 = vadd.f32 %v414, %v482
    %v484 = vpop.f32.mrb[0].mxu0
    %485 = vdwg.mxu0
    %v486 = vmax.f32 %v483, 0.0
    %v487 = vld [vmem:[%s7 + $0x1] sm:$0x1]
    %v489 = vlaneseq
    %v490 = vshrl.u32 %v489, 7
    %v491 = vsub.s32 0, %v490
    %v492 = vrot.slane %v487, %v491
    %v494 = vmul.f32 %v486, %v492
    %v495 = vsel %vm88, %v494, 0.0
    %496 = vadd.xlane.f32.xlu0 %v495
    %v497 = vpop.xlane.xlu0 %496
    %v498 = vadd.f32 %v376, %v497
    %s499 = sld [smem:[#allocation2]]
    %v500 = vstv %s499
    %v501 = vadd.f32 %v498, %v500
    %vm502 = vcmask 1024
    %503 = vst.msk [vmem:[%s9] sm:$0x3] %vm502, %v501
    // Predicated region
    $region50: #{soft_q_forward.1} parent=1 // pred_check
      _
    $region51: #{soft_q_forward.1} parent=1 // pred_check_branch
      %505 = sbr.rel (0) target = $region53
    $region52: #{soft_q_forward.1} parent=1 // pred_region
      _
    $region53: #{soft_q_forward.1} parent=1 // pred_fallthru
      _
    // Predicated region
    $region54: #{soft_q_forward.1} parent=1 // pred_check
      _
    $region55: #{soft_q_forward.1} parent=1 // pred_check_branch
      %507 = sbr.rel (0) target = $region57
    $region56: #{soft_q_forward.1} parent=1 // pred_region
      _
    $region57: #{soft_q_forward.1} parent=1 // pred_fallthru
      _
    %508 = vsyncpa [#allocation4], 1
    %509 = vsyncpa [#allocation6], 1

</llo_original>
